<compile_context>
chip_gen: v7x
topology: tpu7x:2x2x1
jax: 0.10.0
libtpu: 0.0.40
codegen_flags: <defaults>
</compile_context>

<pallas_src>
import functools

import jax
import jax.numpy as jnp
from jax.experimental import pallas as pl
from jax.experimental.pallas import tpu as pltpu

SUBLANE = 8


def _round_up(n, m):
    return ((n + m - 1) // m) * m


def _cdiv(a, b):
    return -(-a // b)


def _actor_kernel(x_ref, w1_ref, w2_ref, w3_ref, b1_ref, b2_ref, b3_ref, o_ref,
                  *, softmax):
    # Layer 1: Linear(state -> hidden) + ReLU. MXU matmul with f32 accumulate,
    # f32 elementwise epilogue (v5e has no bf16 VPU).
    h = jnp.dot(x_ref[...], w1_ref[...], preferred_element_type=jnp.float32)
    h = jnp.maximum(h + b1_ref[...], 0.0)
    # Layer 2: Linear(hidden -> hidden) + ReLU.
    h = jnp.dot(h.astype(w2_ref.dtype), w2_ref[...],
                preferred_element_type=jnp.float32)
    h = jnp.maximum(h + b2_ref[...], 0.0)
    # Layer 3: Linear(hidden -> action): raw logits.
    logits = jnp.dot(h.astype(w3_ref.dtype), w3_ref[...],
                     preferred_element_type=jnp.float32)
    logits = logits + b3_ref[...]
    if softmax:
        # Fused softmax epilogue: exp / reciprocal hit the EUP slot, the row
        # reduces hit the XLU slot — both free under MXU/DMA slack here.
        m = jnp.max(logits, axis=-1, keepdims=True)
        e = jnp.exp(logits - m)
        denom = jnp.sum(e, axis=-1, keepdims=True)
        o_ref[...] = (e * pl.reciprocal(denom, approx=True)).astype(o_ref.dtype)
    else:
        o_ref[...] = logits.astype(o_ref.dtype)


def prepare_actor_params(params, compute_dtype=jnp.bfloat16):
    """One-time prep: cast weights to the MXU operand dtype, biases to f32 rows.

    Do this once (outside the training/acting loop) so actor_forward's
    pallas_call receives ready-to-stream operands with zero per-call prep.
    """
    return {
        "w1": params["w1"].astype(compute_dtype),
        "w2": params["w2"].astype(compute_dtype),
        "w3": params["w3"].astype(compute_dtype),
        "b1": params["b1"].reshape(1, -1).astype(jnp.float32),
        "b2": params["b2"].reshape(1, -1).astype(jnp.float32),
        "b3": params["b3"].reshape(1, -1).astype(jnp.float32),
    }


@functools.partial(jax.jit, static_argnames=("softmax", "max_tile"))
def _actor_apply(x, prep, softmax=False, max_tile=1024):
    """x: [B, state_dim] f32. prep: prepare_actor_params output. -> [B, A] f32."""
    w1, w2, w3 = prep["w1"], prep["w2"], prep["w3"]
    b1, b2, b3 = prep["b1"], prep["b2"], prep["b3"]
    B, state_dim = x.shape
    hidden_dim = w1.shape[1]
    action_dim = w3.shape[1]
    compute_dtype = w1.dtype

    # Batch tiling: two equal tiles for small/medium batches (keeps both v7x
    # TensorCores busy; costs one extra ~0.35us step on single-TC v5e/v6e),
    # 1024-row tiles for large batches.  Per-step VMEM at tile_b=1024 is well
    # under the scoped limit on every generation, so no vmem override needed.
    if B <= 2 * max_tile:
        tile_b = max(SUBLANE, _round_up(_cdiv(B, 2), SUBLANE))
        B_pad = 2 * tile_b
    else:
        tile_b = max_tile
        B_pad = _round_up(B, tile_b)
    grid = (B_pad // tile_b,)

    # Only per-call prep on x: pad the batch axis and cast to the operand dtype
    # (single fused XLA op under jit; allow_input_fusion lets it fold into the
    # pallas_call).  Feature dims stay at their natural (narrow) sizes.
    x_p = x
    if B_pad != B:
        x_p = jnp.pad(x_p, ((0, B_pad - B), (0, 0)))
    x_p = x_p.astype(compute_dtype)

    elt = jnp.dtype(compute_dtype).itemsize
    cost = pl.CostEstimate(
        flops=2 * B_pad * (state_dim * hidden_dim
                           + hidden_dim * hidden_dim
                           + hidden_dim * action_dim),
        transcendentals=(B_pad * action_dim) if softmax else 0,
        bytes_accessed=(B_pad * state_dim
                        + state_dim * hidden_dim
                        + hidden_dim * hidden_dim
                        + hidden_dim * action_dim) * elt
        + (2 * hidden_dim + action_dim) * 4
        + B_pad * action_dim * 4,
    )

    out = pl.pallas_call(
        functools.partial(_actor_kernel, softmax=softmax),
        out_shape=jax.ShapeDtypeStruct((B_pad, action_dim), jnp.float32),
        grid=grid,
        in_specs=[
            # x streams narrow over the batch; weights/biases stay VMEM-resident.
            pl.BlockSpec((tile_b, state_dim), lambda i: (i, 0)),
            pl.BlockSpec((state_dim, hidden_dim), lambda i: (0, 0)),
            pl.BlockSpec((hidden_dim, hidden_dim), lambda i: (0, 0)),
            pl.BlockSpec((hidden_dim, action_dim), lambda i: (0, 0)),
            pl.BlockSpec((1, hidden_dim), lambda i: (0, 0)),
            pl.BlockSpec((1, hidden_dim), lambda i: (0, 0)),
            pl.BlockSpec((1, action_dim), lambda i: (0, 0)),
        ],
        out_specs=pl.BlockSpec((tile_b, action_dim), lambda i: (i, 0)),
        compiler_params=pltpu.CompilerParams(
            dimension_semantics=("parallel",),  # shard batch tiles across v7x TCs
            allow_input_fusion=[True, False, False, False, False, False, False],
        ),
        cost_estimate=cost,
    )(x_p, w1, w2, w3, b1, b2, b3)

    return out if B_pad == B else out[:B]


def actor_forward(x, prep):
    """Actor.forward: logits [B, action_dim] (f32)."""
    return _actor_apply(x, prep, softmax=False)


def predict_prob(x, prep):
    """Actor.predict_prob: softmax fused into the kernel epilogue."""
    return _actor_apply(x, prep, softmax=True)


def init_actor_params(key, state_dim, hidden_dim, action_dim):
    """Deterministic init mimicking nn.Linear default U(-1/sqrt(fan_in), +)."""
    ks = jax.random.split(key, 6)

    def linear(kw, kb, fan_in, fan_out):
        bound = 1.0 / jnp.sqrt(jnp.float32(fan_in))
        w = jax.random.uniform(kw, (fan_in, fan_out), jnp.float32, -bound, bound)
        b = jax.random.uniform(kb, (fan_out,), jnp.float32, -bound, bound)
        return w, b

    w1, b1 = linear(ks[0], ks[1], state_dim, hidden_dim)
    w2, b2 = linear(ks[2], ks[3], hidden_dim, hidden_dim)
    w3, b3 = linear(ks[4], ks[5], hidden_dim, action_dim)
    return dict(w1=w1, b1=b1, w2=w2, b2=b2, w3=w3, b3=b3)


def actor_forward_ref(x, p):
    h1 = jnp.maximum(x @ p["w1"] + p["b1"], 0.0)
    h2 = jnp.maximum(h1 @ p["w2"] + p["b2"], 0.0)
    return h2 @ p["w3"] + p["b3"]


if __name__ == "__main__":
    state_dim, hidden_dim, action_dim = 16, 32, 8

    key = jax.random.PRNGKey(0)
    k_params, k_x1, k_x2 = jax.random.split(key, 3)
    params = init_actor_params(k_params, state_dim, hidden_dim, action_dim)

    # One-time operand prep (the perf-review "pre-bake the weights" item).
    prep_f32 = prepare_actor_params(params, compute_dtype=jnp.float32)
    prep_bf16 = prepare_actor_params(params)  # bf16 operands, f32 accumulation

    x_small = jax.random.normal(k_x1, (8, state_dim), dtype=jnp.float32)
    x_big = jax.random.normal(k_x2, (1000, state_dim), dtype=jnp.float32)
    ref_small = actor_forward_ref(x_small, params)
    ref_big = actor_forward_ref(x_big, params)

    # Exact f32 path (tight check) — small batch: 2 tiles of 8 rows.
    out_small = actor_forward(x_small, prep_f32)
    jax.block_until_ready(out_small)
    assert out_small.shape == (8, action_dim)
    assert jnp.allclose(out_small, ref_small, atol=1e-5, rtol=1e-5)

    # Exact f32 path — larger batch: 2 tiles of 504 rows (1000 -> 1008 padded).
    out_big = actor_forward(x_big, prep_f32)
    jax.block_until_ready(out_big)
    assert out_big.shape == (1000, action_dim)
    assert jnp.allclose(out_big, ref_big, atol=1e-5, rtol=1e-5)

    # Default bf16 operand path (f32 accumulation + f32 epilogue) — loose check.
    out_bf16 = actor_forward(x_big, prep_bf16)
    jax.block_until_ready(out_bf16)
    assert jnp.allclose(out_bf16, ref_big, atol=5e-2, rtol=5e-2)

    # predict_prob with the softmax fused into the kernel epilogue.
    probs = predict_prob(x_small, prep_bf16)
    jax.block_until_ready(probs)
    ref_probs = jax.nn.softmax(ref_small, axis=-1)
    assert probs.shape == (8, action_dim)
    assert jnp.allclose(jnp.sum(probs, axis=-1), 1.0, atol=1e-2)
    assert jnp.allclose(probs, ref_probs, atol=2e-2)

    # TODO(synk): greedy_action / explore_action (argmax / Categorical sampling
    # with possible_actions masking and .item()) are host-side scalar policy
    # logic; they consume these kernel outputs in plain JAX / Python.
    print("KERNEL_OK")
</pallas_src>

<mosaic_0001>
module attributes {stable_mosaic.version = 11 : i64} {
  func.func @_actor_kernel(%arg0: i32, %arg1: memref<8x16xf32, #tpu.memory_space<vmem>>, %arg2: memref<16x32xf32, #tpu.memory_space<vmem>>, %arg3: memref<32x32xf32, #tpu.memory_space<vmem>>, %arg4: memref<32x8xf32, #tpu.memory_space<vmem>>, %arg5: memref<1x32xf32, #tpu.memory_space<vmem>>, %arg6: memref<1x32xf32, #tpu.memory_space<vmem>>, %arg7: memref<1x8xf32, #tpu.memory_space<vmem>>, %arg8: memref<8x8xf32, #tpu.memory_space<vmem>>) attributes {dimension_semantics = [#tpu.dimension_semantics<parallel>], iteration_bounds = array<i64: 2>, scalar_prefetch = 0 : i64, scratch_operands = 0 : i64, tpu.core_type = #tpu.core_type<tc>, window_params = [{transform_indices = @transform_0, window_bounds = array<i64: 8, 16>}, {pipeline_mode = #tpu.pipeline_mode<synchronous>, transform_indices = @transform_1, window_bounds = array<i64: 16, 32>}, {pipeline_mode = #tpu.pipeline_mode<synchronous>, transform_indices = @transform_2, window_bounds = array<i64: 32, 32>}, {pipeline_mode = #tpu.pipeline_mode<synchronous>, transform_indices = @transform_3, window_bounds = array<i64: 32, 8>}, {pipeline_mode = #tpu.pipeline_mode<synchronous>, transform_indices = @transform_4, window_bounds = array<i64: 1, 32>}, {pipeline_mode = #tpu.pipeline_mode<synchronous>, transform_indices = @transform_5, window_bounds = array<i64: 1, 32>}, {pipeline_mode = #tpu.pipeline_mode<synchronous>, transform_indices = @transform_6, window_bounds = array<i64: 1, 8>}, {transform_indices = @transform_7, window_bounds = array<i64: 8, 8>}]} {
    %c0 = arith.constant 0 : index
    %c0_0 = arith.constant 0 : index
    %0 = vector.load %arg1[%c0, %c0_0] : memref<8x16xf32, #tpu.memory_space<vmem>>, vector<8x16xf32>
    %c0_1 = arith.constant 0 : index
    %c0_2 = arith.constant 0 : index
    %1 = vector.load %arg2[%c0_1, %c0_2] : memref<16x32xf32, #tpu.memory_space<vmem>>, vector<16x32xf32>
    %cst = arith.constant dense<0.000000e+00> : vector<8x32xf32>
    %2 = tpu.matmul %0, %1, %cst {dimension_numbers = #tpu.dot_dimension_numbers<[1], [0], [0], [1], [0, 0, 1, 1], [], []>} : vector<8x16xf32>, vector<16x32xf32>, vector<8x32xf32> -> vector<8x32xf32>
    %c0_3 = arith.constant 0 : index
    %c0_4 = arith.constant 0 : index
    %3 = vector.load %arg5[%c0_3, %c0_4] : memref<1x32xf32, #tpu.memory_space<vmem>>, vector<1x32xf32>
    %4 = vector.broadcast %3 : vector<1x32xf32> to vector<8x32xf32>
    %5 = arith.addf %2, %4 : vector<8x32xf32>
    %cst_5 = arith.constant 0.000000e+00 : f32
    %6 = vector.broadcast %cst_5 : f32 to vector<8x32xf32>
    %7 = arith.maximumf %5, %6 : vector<8x32xf32>
    %c0_6 = arith.constant 0 : index
    %c0_7 = arith.constant 0 : index
    %8 = vector.load %arg3[%c0_6, %c0_7] : memref<32x32xf32, #tpu.memory_space<vmem>>, vector<32x32xf32>
    %cst_8 = arith.constant dense<0.000000e+00> : vector<8x32xf32>
    %9 = tpu.matmul %7, %8, %cst_8 {dimension_numbers = #tpu.dot_dimension_numbers<[1], [0], [0], [1], [0, 0, 1, 1], [], []>} : vector<8x32xf32>, vector<32x32xf32>, vector<8x32xf32> -> vector<8x32xf32>
    %c0_9 = arith.constant 0 : index
    %c0_10 = arith.constant 0 : index
    %10 = vector.load %arg6[%c0_9, %c0_10] : memref<1x32xf32, #tpu.memory_space<vmem>>, vector<1x32xf32>
    %11 = vector.broadcast %10 : vector<1x32xf32> to vector<8x32xf32>
    %12 = arith.addf %9, %11 : vector<8x32xf32>
    %cst_11 = arith.constant 0.000000e+00 : f32
    %13 = vector.broadcast %cst_11 : f32 to vector<8x32xf32>
    %14 = arith.maximumf %12, %13 : vector<8x32xf32>
    %c0_12 = arith.constant 0 : index
    %c0_13 = arith.constant 0 : index
    %15 = vector.load %arg4[%c0_12, %c0_13] : memref<32x8xf32, #tpu.memory_space<vmem>>, vector<32x8xf32>
    %cst_14 = arith.constant dense<0.000000e+00> : vector<8x8xf32>
    %16 = tpu.matmul %14, %15, %cst_14 {dimension_numbers = #tpu.dot_dimension_numbers<[1], [0], [0], [1], [0, 0, 1, 1], [], []>} : vector<8x32xf32>, vector<32x8xf32>, vector<8x8xf32> -> vector<8x8xf32>
    %c0_15 = arith.constant 0 : index
    %c0_16 = arith.constant 0 : index
    %17 = vector.load %arg7[%c0_15, %c0_16] : memref<1x8xf32, #tpu.memory_space<vmem>>, vector<1x8xf32>
    %18 = vector.broadcast %17 : vector<1x8xf32> to vector<8x8xf32>
    %19 = arith.addf %16, %18 : vector<8x8xf32>
    %c0_17 = arith.constant 0 : index
    %c0_18 = arith.constant 0 : index
    %20 = vector.load %arg8[%c0_17, %c0_18] : memref<8x8xf32, #tpu.memory_space<vmem>>, vector<8x8xf32>
    tpu.vector_store %arg8[%c0_17, %c0_18], %19 {strides = array<i32>} : memref<8x8xf32, #tpu.memory_space<vmem>>, vector<8x8xf32>,
    return
  }
  func.func @transform_0(%arg0: i32) -> (i32, i32) {
    %c0_i32 = arith.constant 0 : i32
    %c0_i32_0 = arith.constant 0 : i32
    return %arg0, %c0_i32 : i32, i32
  }
  func.func @transform_1(%arg0: i32) -> (i32, i32) {
    %c0_i32 = arith.constant 0 : i32
    %c0_i32_0 = arith.constant 0 : i32
    %c0_i32_1 = arith.constant 0 : i32
    return %c0_i32, %c0_i32_0 : i32, i32
  }
  func.func @transform_2(%arg0: i32) -> (i32, i32) {
    %c0_i32 = arith.constant 0 : i32
    %c0_i32_0 = arith.constant 0 : i32
    %c0_i32_1 = arith.constant 0 : i32
    return %c0_i32, %c0_i32_0 : i32, i32
  }
  func.func @transform_3(%arg0: i32) -> (i32, i32) {
    %c0_i32 = arith.constant 0 : i32
    %c0_i32_0 = arith.constant 0 : i32
    %c0_i32_1 = arith.constant 0 : i32
    return %c0_i32, %c0_i32_0 : i32, i32
  }
  func.func @transform_4(%arg0: i32) -> (i32, i32) {
    %c0_i32 = arith.constant 0 : i32
    %c0_i32_0 = arith.constant 0 : i32
    %c0_i32_1 = arith.constant 0 : i32
    return %c0_i32, %c0_i32_0 : i32, i32
  }
  func.func @transform_5(%arg0: i32) -> (i32, i32) {
    %c0_i32 = arith.constant 0 : i32
    %c0_i32_0 = arith.constant 0 : i32
    %c0_i32_1 = arith.constant 0 : i32
    return %c0_i32, %c0_i32_0 : i32, i32
  }
  func.func @transform_6(%arg0: i32) -> (i32, i32) {
    %c0_i32 = arith.constant 0 : i32
    %c0_i32_0 = arith.constant 0 : i32
    %c0_i32_1 = arith.constant 0 : i32
    return %c0_i32, %c0_i32_0 : i32, i32
  }
  func.func @transform_7(%arg0: i32) -> (i32, i32) {
    %c0_i32 = arith.constant 0 : i32
    %c0_i32_0 = arith.constant 0 : i32
    return %arg0, %c0_i32 : i32, i32
  }
}

</mosaic_0001>

<llo_original>
// kernel: _actor_apply.2
$region0: #{_actor_apply.2}
  #allocation0 [shape = 'u32[]', space=smem, size = 0x4, offset = 0x4, fixed_abs, tag = 'smem constant byte address 0x4 - core index']
  #allocation1 [shape = 'u32[144,128]{1,0:T(1,128)}', space=vmem, size = 0x12000, scoped, tag = 'internal scratch']
  #allocation2 [shape = 'u32[2048]{0}', space=vmem, size = 0x2000, scoped, tag = 'scoped memory for _actor_apply.2']
  #allocation3 [shape = 'u32[2048]{0}', space=vmem, size = 0x2000, scoped, tag = 'scoped memory for _actor_apply.2']
  #allocation4 [shape = 'u32[2048]{0}', space=vmem, size = 0x2000, scoped, tag = 'scoped memory for _actor_apply.2']
  #allocation5 [shape = 'u32[2048]{0}', space=vmem, size = 0x2000, scoped, tag = 'scoped memory for _actor_apply.2']
  #allocation6 [shape = 'u32[2048]{0}', space=vmem, size = 0x2000, scoped, tag = 'scoped memory for _actor_apply.2']
  %s0 = inlined_call_operand.vmem [shape: f32[16,32], index: 0, kind: input, shape index: {}]
  %s1 = inlined_call_operand.vmem [shape: f32[32,32], index: 1, kind: input, shape index: {}]
  %s2 = inlined_call_operand.vmem [shape: f32[32,8], index: 2, kind: input, shape index: {}]
  %s3 = inlined_call_operand.vmem [shape: f32[1,32], index: 3, kind: input, shape index: {}]
  %s4 = inlined_call_operand.vmem [shape: f32[1,32], index: 4, kind: input, shape index: {}]
  %s5 = inlined_call_operand.vmem [shape: f32[1,8], index: 5, kind: input, shape index: {}]
  %s6 = inlined_call_operand.hbm [shape: f32[8,16], index: 6, kind: input, shape index: {}]
  %s7 = inlined_call_operand.<no memory space> [shape: f32[], index: 7, kind: input, shape index: {}]
  %s8 = inlined_call_operand.vmem [shape: f32[16,8], index: 8, kind: output, shape index: {}]
  %s9 = sld [smem:[#allocation0]]
  $region65: #{_actor_apply.2} parent=0
    _
  %s11 = ssub.s32 1, %s9
  %s12 = scalar_select 0, %s11, %s9
  %v13 = vstv %s7
  $region1: #{_actor_apply.2} parent=0
    #allocation7 [shape = 'u8[8192]{0}', space=vmem, size = 0x2000, scoped, tag = 'operand span for operand 6']
    #allocation8 [shape = 's32[2]{0}', space=sflag, size = 0x8, scoped, tag = 'scoped memory for _actor_apply.2']
    %14 = vsyncpa [#allocation8], 0
    %s15 = scalar_lea.sflag [#allocation8], 1
    %16 = vsyncpa %s15, 0
    loop: start=0, step=1, limit=4
    $region2: #{_actor_apply.2} parent=1 // loop_pre_header
      _
    $region3: #{_actor_apply.2} parent=1 // loop_header
      %s18 = sphi 0, %s22
      %p19 = scmp.ge.s32.totalorder %s18, 4
      %s28 = sphi 0, %s30
      %s31 = sphi 0, %s28
      %s32 = sphi 0, %s31
      %s48 = sphi 0, %s32
      %s52 = sphi 0, %s52
      %s54 = sphi 0, %s52
      %s55 = sphi 0, %s54
      %s69 = sphi 0, %s55
      %s73 = sphi 0, %s73
      %s75 = sphi 0, %s73
      %s76 = sphi 0, %s75
      %s90 = sphi 0, %s76
      %s94 = sphi 0, %s94
      %s96 = sphi 0, %s94
      %s97 = sphi 0, %s96
      %s111 = sphi 0, %s97
      %s115 = sphi 0, %s115
      %s117 = sphi 0, %s115
      %s118 = sphi 0, %s117
      %s132 = sphi 0, %s118
      %s136 = sphi 0, %s136
      %s138 = sphi 0, %s136
      %s139 = sphi 0, %s138
      %s153 = sphi 0, %s139
      %s157 = sphi 0, %s157
      %s159 = sphi 0, %s157
      %s160 = sphi 0, %s159
      %s174 = sphi 0, %s160
      %s180 = sphi 0, %s182
      %s183 = sphi 0, %s180
      %s184 = sphi 0, %s183
      %s200 = sphi 0, %s184
    $region4: #{_actor_apply.2} parent=1 // loop_header_branch
      %21 = sbr.rel (%p19) target = $region8
    $region5: #{_actor_apply.2} parent=1 // loop_body
      %s23 = ssub.s32 %s18, 1
      %s24 = ssub.s32 %s18, 2
      %s25 = sadd.s32 %s18, 1
      %s26 = ssub.s32 %s18, %s25
      %p27 = scmp.eq.s32.totalorder %s26, 0
      %s29 = sadd.s32 %s28, 1
      %s30 = scalar_select %p27, %s28, %s29
      %p33 = pneg %p27
      %p34 = scmp.eq.s32.totalorder %s18, 1
      %p35 = por %p33, %p34
      %p36 = scmp.ne.s32.totalorder %s28, %s31
      %p37 = scmp.eq.s32.totalorder %s18, 0
      %p38 = por %p36, %p37
      %p39 = scmp.ne.s32.totalorder %s28, %s31
      %p40 = scmp.eq.s32.totalorder %s23, 1
      %p41 = por %p39, %p40
      %p42 = scmp.ne.s32.totalorder %s31, %s32
      %p43 = scmp.eq.s32.totalorder %s23, 0
      %p44 = por %p42, %p43
      %p45 = scmp.ne.s32.totalorder %s31, %s32
      %p46 = scmp.eq.s32.totalorder %s24, 1
      %p47 = por %p45, %p46
      %p49 = scmp.ne.s32.totalorder %s32, %s48
      %p50 = scmp.eq.s32.totalorder %s24, 0
      %p51 = por %p49, %p50
      %s53 = sadd.s32 %s52, 1
      %p56 = scmp.eq.s32.totalorder %s18, 1
      %p57 = scmp.ne.s32.totalorder %s52, %s54
      %p58 = scmp.eq.s32.totalorder %s18, 0
      %p59 = por %p57, %p58
      %p60 = scmp.ne.s32.totalorder %s52, %s54
      %p61 = scmp.eq.s32.totalorder %s23, 1
      %p62 = por %p60, %p61
      %p63 = scmp.ne.s32.totalorder %s54, %s55
      %p64 = scmp.eq.s32.totalorder %s23, 0
      %p65 = por %p63, %p64
      %p66 = scmp.ne.s32.totalorder %s54, %s55
      %p67 = scmp.eq.s32.totalorder %s24, 1
      %p68 = por %p66, %p67
      %p70 = scmp.ne.s32.totalorder %s55, %s69
      %p71 = scmp.eq.s32.totalorder %s24, 0
      %p72 = por %p70, %p71
      %s74 = sadd.s32 %s73, 1
      %p77 = scmp.eq.s32.totalorder %s18, 1
      %p78 = scmp.ne.s32.totalorder %s73, %s75
      %p79 = scmp.eq.s32.totalorder %s18, 0
      %p80 = por %p78, %p79
      %p81 = scmp.ne.s32.totalorder %s73, %s75
      %p82 = scmp.eq.s32.totalorder %s23, 1
      %p83 = por %p81, %p82
      %p84 = scmp.ne.s32.totalorder %s75, %s76
      %p85 = scmp.eq.s32.totalorder %s23, 0
      %p86 = por %p84, %p85
      %p87 = scmp.ne.s32.totalorder %s75, %s76
      %p88 = scmp.eq.s32.totalorder %s24, 1
      %p89 = por %p87, %p88
      %p91 = scmp.ne.s32.totalorder %s76, %s90
      %p92 = scmp.eq.s32.totalorder %s24, 0
      %p93 = por %p91, %p92
      %s95 = sadd.s32 %s94, 1
      %p98 = scmp.eq.s32.totalorder %s18, 1
      %p99 = scmp.ne.s32.totalorder %s94, %s96
      %p100 = scmp.eq.s32.totalorder %s18, 0
      %p101 = por %p99, %p100
      %p102 = scmp.ne.s32.totalorder %s94, %s96
      %p103 = scmp.eq.s32.totalorder %s23, 1
      %p104 = por %p102, %p103
      %p105 = scmp.ne.s32.totalorder %s96, %s97
      %p106 = scmp.eq.s32.totalorder %s23, 0
      %p107 = por %p105, %p106
      %p108 = scmp.ne.s32.totalorder %s96, %s97
      %p109 = scmp.eq.s32.totalorder %s24, 1
      %p110 = por %p108, %p109
      %p112 = scmp.ne.s32.totalorder %s97, %s111
      %p113 = scmp.eq.s32.totalorder %s24, 0
      %p114 = por %p112, %p113
      %s116 = sadd.s32 %s115, 1
      %p119 = scmp.eq.s32.totalorder %s18, 1
      %p120 = scmp.ne.s32.totalorder %s115, %s117
      %p121 = scmp.eq.s32.totalorder %s18, 0
      %p122 = por %p120, %p121
      %p123 = scmp.ne.s32.totalorder %s115, %s117
      %p124 = scmp.eq.s32.totalorder %s23, 1
      %p125 = por %p123, %p124
      %p126 = scmp.ne.s32.totalorder %s117, %s118
      %p127 = scmp.eq.s32.totalorder %s23, 0
      %p128 = por %p126, %p127
      %p129 = scmp.ne.s32.totalorder %s117, %s118
      %p130 = scmp.eq.s32.totalorder %s24, 1
      %p131 = por %p129, %p130
      %p133 = scmp.ne.s32.totalorder %s118, %s132
      %p134 = scmp.eq.s32.totalorder %s24, 0
      %p135 = por %p133, %p134
      %s137 = sadd.s32 %s136, 1
      %p140 = scmp.eq.s32.totalorder %s18, 1
      %p141 = scmp.ne.s32.totalorder %s136, %s138
      %p142 = scmp.eq.s32.totalorder %s18, 0
      %p143 = por %p141, %p142
      %p144 = scmp.ne.s32.totalorder %s136, %s138
      %p145 = scmp.eq.s32.totalorder %s23, 1
      %p146 = por %p144, %p145
      %p147 = scmp.ne.s32.totalorder %s138, %s139
      %p148 = scmp.eq.s32.totalorder %s23, 0
      %p149 = por %p147, %p148
      %p150 = scmp.ne.s32.totalorder %s138, %s139
      %p151 = scmp.eq.s32.totalorder %s24, 1
      %p152 = por %p150, %p151
      %p154 = scmp.ne.s32.totalorder %s139, %s153
      %p155 = scmp.eq.s32.totalorder %s24, 0
      %p156 = por %p154, %p155
      %s158 = sadd.s32 %s157, 1
      %p161 = scmp.eq.s32.totalorder %s18, 1
      %p162 = scmp.ne.s32.totalorder %s157, %s159
      %p163 = scmp.eq.s32.totalorder %s18, 0
      %p164 = por %p162, %p163
      %p165 = scmp.ne.s32.totalorder %s157, %s159
      %p166 = scmp.eq.s32.totalorder %s23, 1
      %p167 = por %p165, %p166
      %p168 = scmp.ne.s32.totalorder %s159, %s160
      %p169 = scmp.eq.s32.totalorder %s23, 0
      %p170 = por %p168, %p169
      %p171 = scmp.ne.s32.totalorder %s159, %s160
      %p172 = scmp.eq.s32.totalorder %s24, 1
      %p173 = por %p171, %p172
      %p175 = scmp.ne.s32.totalorder %s160, %s174
      %p176 = scmp.eq.s32.totalorder %s24, 0
      %p177 = por %p175, %p176
      %s178 = ssub.s32 %s18, %s25
      %p179 = scmp.eq.s32.totalorder %s178, 0
      %s181 = sadd.s32 %s180, 1
      %s182 = scalar_select %p179, %s180, %s181
      %p185 = pneg %p179
      %p186 = scmp.eq.s32.totalorder %s18, 1
      %p187 = por %p185, %p186
      %p188 = scmp.ne.s32.totalorder %s180, %s183
      %p189 = scmp.eq.s32.totalorder %s18, 0
      %p190 = por %p188, %p189
      %p191 = scmp.ne.s32.totalorder %s180, %s183
      %p192 = scmp.eq.s32.totalorder %s23, 1
      %p193 = por %p191, %p192
      %p194 = scmp.ne.s32.totalorder %s183, %s184
      %p195 = scmp.eq.s32.totalorder %s23, 0
      %p196 = por %p194, %p195
      %p197 = scmp.ne.s32.totalorder %s183, %s184
      %p198 = scmp.eq.s32.totalorder %s24, 1
      %p199 = por %p197, %p198
      %p201 = scmp.ne.s32.totalorder %s184, %s200
      %p202 = scmp.eq.s32.totalorder %s24, 0
      %p203 = por %p201, %p202
      %p204 = scmp.le.s32.totalorder 1, %s18
      %p205 = scmp.lt.s32.totalorder %s18, 3
      %p206 = pnand %p204, %p205
      %p207 = pneg %p206
      // Predicated region
      $region9: #{_actor_apply.2} parent=5 // pred_check
        _
      $region10: #{_actor_apply.2} parent=5 // pred_check_branch
        %209 = sbr.rel (%p206) target = $region12
      $region11: #{_actor_apply.2} parent=5 // pred_region
        %s210 = ssub.s32 %s18, 1
        // Predicated region
        $region13: #{_actor_apply.2} parent=11 // pred_check
          %p211 = pneg %p65
        $region14: #{_actor_apply.2} parent=11 // pred_check_branch
          %213 = sbr.rel (%p211) target = $region16
        $region15: #{_actor_apply.2} parent=11 // pred_region
          _
        $region16: #{_actor_apply.2} parent=11 // pred_fallthru
          _
        // Predicated region
        $region17: #{_actor_apply.2} parent=11 // pred_check
          %p214 = pneg %p86
        $region18: #{_actor_apply.2} parent=11 // pred_check_branch
          %216 = sbr.rel (%p214) target = $region20
        $region19: #{_actor_apply.2} parent=11 // pred_region
          _
        $region20: #{_actor_apply.2} parent=11 // pred_fallthru
          _
        // Predicated region
        $region21: #{_actor_apply.2} parent=11 // pred_check
          %p217 = pneg %p107
        $region22: #{_actor_apply.2} parent=11 // pred_check_branch
          %219 = sbr.rel (%p217) target = $region24
        $region23: #{_actor_apply.2} parent=11 // pred_region
          _
        $region24: #{_actor_apply.2} parent=11 // pred_fallthru
          _
        // Predicated region
        $region25: #{_actor_apply.2} parent=11 // pred_check
          %p220 = pneg %p128
        $region26: #{_actor_apply.2} parent=11 // pred_check_branch
          %222 = sbr.rel (%p220) target = $region28
        $region27: #{_actor_apply.2} parent=11 // pred_region
          _
        $region28: #{_actor_apply.2} parent=11 // pred_fallthru
          _
        // Predicated region
        $region29: #{_actor_apply.2} parent=11 // pred_check
          %p223 = pneg %p149
        $region30: #{_actor_apply.2} parent=11 // pred_check_branch
          %225 = sbr.rel (%p223) target = $region32
        $region31: #{_actor_apply.2} parent=11 // pred_region
          _
        $region32: #{_actor_apply.2} parent=11 // pred_fallthru
          _
        // Predicated region
        $region33: #{_actor_apply.2} parent=11 // pred_check
          %p226 = pneg %p170
        $region34: #{_actor_apply.2} parent=11 // pred_check_branch
          %228 = sbr.rel (%p226) target = $region36
        $region35: #{_actor_apply.2} parent=11 // pred_region
          _
        $region36: #{_actor_apply.2} parent=11 // pred_fallthru
          _
      $region12: #{_actor_apply.2} parent=5 // pred_fallthru
        _
      %p229 = scmp.lt.s32.totalorder %s18, 2
      // Predicated region
      $region37: #{_actor_apply.2} parent=5 // pred_check
        %p230 = pneg %p229
      $region38: #{_actor_apply.2} parent=5 // pred_check_branch
        %232 = sbr.rel (%p230) target = $region40
      $region39: #{_actor_apply.2} parent=5 // pred_region
        // Predicated region
        $region41: #{_actor_apply.2} parent=39 // pred_check
          %p233 = pneg %p38
        $region42: #{_actor_apply.2} parent=39 // pred_check_branch
          %235 = sbr.rel (%p233) target = $region44
        $region43: #{_actor_apply.2} parent=39 // pred_region
          %s236 = sand.u32 %s28, 1
          %s237 = scalar_lea.sflag [#allocation8], %s236
          %s238 = sand.u32 %s28, 1
          %s239 = smul.addr %s238, 8
          %s240 = scalar_lea.vmem [#allocation7], %s239
          %s241 = ssub.s32 1, %s18
          %s242 = smul.u32 128, %s241
          %s244 = ssub.s32 128, %s242
          %245 = vsyncadd %s237, %s244
          %p246 = scmp.ne.s32.totalorder 0, %s242
          %s247 = smul.addr %s18, 128
          %s248 = scalar_lea.hbm %s6, %s247
          %s250 = sshll.u32 %s240, 4
          %s251 = int_to_ptr.vmem [resolvable:$true] %s250
          %253 = dma.hbm_to_vmem [thread:$0]  (%p246), %s248, 128, %s251, %s237
        $region44: #{_actor_apply.2} parent=39 // pred_fallthru
          _
      $region40: #{_actor_apply.2} parent=5 // pred_fallthru
        _
      %p254 = scmp.le.s32.totalorder 1, %s18
      %p255 = scmp.lt.s32.totalorder %s18, 3
      %p256 = pnand %p254, %p255
      %p257 = pneg %p256
      // Predicated region
      $region45: #{_actor_apply.2} parent=5 // pred_check
        _
      $region46: #{_actor_apply.2} parent=5 // pred_check_branch
        %259 = sbr.rel (%p256) target = $region48
      $region47: #{_actor_apply.2} parent=5 // pred_region
        #allocation9 [shape = 'u8[4096]{0}', space=vmem, size = 0x1000, dematerialized = true, scoped, tag = 'FusionAdapter Buffer %fusion.1 = f32[16,16]{1,0:T(8,128)} fusion(%param_6.1, %param_7), kind=kLoop, calls=%fused_computation.1.clone, metadata={op_name="jit(_actor_apply)/jit(_pad)/pad" stack_frame_id=1}']
        %s260 = ssub.s32 %s18, 1
        %s261 = sand.u32 %s31, 1
        %s262 = scalar_lea.sflag [#allocation8], %s261
        %s263 = sand.u32 %s31, 1
        %s264 = smul.addr %s263, 8
        %s265 = scalar_lea.vmem [#allocation7], %s264
        // Predicated region
        $region49: #{_actor_apply.2} parent=47 // pred_check
          %p266 = pneg %p44
        $region50: #{_actor_apply.2} parent=47 // pred_check_branch
          %268 = sbr.rel (%p266) target = $region52
        $region51: #{_actor_apply.2} parent=47 // pred_region
          %269 = dma.done %s262, 128
        $region52: #{_actor_apply.2} parent=47 // pred_fallthru
          _
        %s270 = sand.u32 %s31, 1
        %s271 = scalar_lea.sflag [#allocation8], %s270
        %s272 = sand.u32 %s31, 1
        %s273 = smul.addr %s272, 8
        %s274 = scalar_lea.vmem [#allocation7], %s273
        %p275 = pneg %p44
        %p276 = pneg %p41
        %p277 = pneg %p65
        %p278 = pneg %p62
        %p279 = pneg %p86
        %p280 = pneg %p83
        %p281 = pneg %p107
        %p282 = pneg %p104
        %p283 = pneg %p128
        %p284 = pneg %p125
        %p285 = pneg %p149
        %p286 = pneg %p146
        %p287 = pneg %p170
        %p288 = pneg %p167
        %p289 = pneg %p196
        %p290 = pneg %p193
        %p291 = scmp.lt.s32.totalorder %s23, 1
        %s292 = scalar_select %p291, %s23, 1
        %s293 = smul.addr %s292, 8
        %s294 = scalar_lea.vmem %s8, %s293
        %s295 = ssub.s32 1, %s23
        %s296 = smul.u32 128, %s295
        %p297 = scmp.lt.s32.totalorder %s23, 1
        %s298 = scalar_select %p297, %s23, 1
        %s299 = smul.addr %s298, 8
        %s300 = scalar_lea.vmem %s8, %s299
        %v301 = vld [vmem:[%s265] sm:$0xff]
        %s302 = ssub.s32 0, %s23
        %v303 = vstv %s302
        %vm304 = vcmp.lt.s32.totalorder %v303, 0
        %v305 = vsel %vm304, %v13, %v301
        %v306 = vlaneseq
        %v307 = vand.u32 %v306, 127
        %vm309 = vcmp.lt.s32.totalorder %v307, 16
        %v310 = vsel %vm309, %v305, %v13
        %312 = vst [vmem:[#allocation9] sm:$0xff] %v310
        %v313 = vld [vmem:[#allocation9] sm:$0xff]
        %v314 = vld [vmem:[%s0] sm:$0xff]
        %v315 = vld [vmem:[%s0 + $0x8] sm:$0xff]
        %v316 = vld [vmem:[%s3] sm:$0x1]
        %v318 = vlaneseq
        %v319 = vshrl.u32 %v318, 7
        %v320 = vsub.s32 0, %v319
        %v321 = vrot.slane %v316, %v320
        %vm323 = vcmask 130048
        %v325 = vsel %vm323, %v313, 0
        %327 = vmatprep.subr.mxu0 0.0
        %328 = vmatpush1.msra.mxu0 %v314
        %329 = vmatprep.subr.mxu0 0.0
        %330 = vmatpush1.msra.mxu0 %v315
        %331 = vmatprep.subr.mxu0 0.0
        %332 = vmatpush1.msra.mxu0 0.0
        %333 = vmatprep.subr.mxu0 0.0
        %334 = vmatpush1.msra.mxu0 0.0
        %335 = vmatprep.subr.mxu0 0.0
        %336 = vmatpush1.msra.mxu0 0.0
        %337 = vmatprep.subr.mxu0 0.0
        %338 = vmatpush1.msra.mxu0 0.0
        %339 = vmatprep.subr.mxu0 0.0
        %340 = vmatpush1.msra.mxu0 0.0
        %341 = vmatprep.subr.mxu0 0.0
        %342 = vmatpush1.msra.mxu0 0.0
        %343 = vmatprep.subr.mxu0 0.0
        %344 = vmatpush1.msra.mxu0 0.0
        %345 = vmatprep.subr.mxu0 0.0
        %346 = vmatpush1.msra.mxu0 0.0
        %347 = vmatprep.subr.mxu0 0.0
        %348 = vmatpush1.msra.mxu0 0.0
        %349 = vmatprep.subr.mxu0 0.0
        %350 = vmatpush1.msra.mxu0 0.0
        %351 = vmatprep.subr.mxu0 0.0
        %352 = vmatpush1.msra.mxu0 0.0
        %353 = vmatprep.subr.mxu0 0.0
        %354 = vmatpush1.msra.mxu0 0.0
        %355 = vmatprep.subr.mxu0 0.0
        %356 = vmatpush1.msra.mxu0 0.0
        %357 = vmatprep.subr.mxu0 0.0
        %358 = vmatpush1.msra.mxu0 0.0
        %359 = vmatprep.subr.mxu0 0.0
        %360 = vmatpush1.msra.mxu0 0.0
        %361 = vmatprep.subr.mxu0 0.0
        %362 = vmatpush1.msra.mxu0 0.0
        %363 = vmatprep.subr.mxu0 0.0
        %364 = vmatpush1.msra.mxu0 0.0
        %365 = vmatprep.subr.mxu0 0.0
        %366 = vmatpush1.msra.mxu0 0.0
        %367 = vmatprep.subr.mxu0 0.0
        %368 = vmatpush1.msra.mxu0 0.0
        %369 = vmatprep.subr.mxu0 0.0
        %370 = vmatpush1.msra.mxu0 0.0
        %371 = vmatprep.subr.mxu0 0.0
        %372 = vmatpush1.msra.mxu0 0.0
        %373 = vmatprep.subr.mxu0 0.0
        %374 = vmatpush1.msra.mxu0 0.0
        %375 = vmatprep.subr.mxu0 0.0
        %376 = vmatpush1.msra.mxu0 0.0
        %377 = vmatprep.subr.mxu0 0.0
        %378 = vmatpush1.msra.mxu0 0.0
        %379 = vmatprep.subr.mxu0 0.0
        %380 = vmatpush1.msra.mxu0 0.0
        %381 = vmatprep.subr.mxu0 0.0
        %382 = vmatpush1.msra.mxu0 0.0
        %383 = vmatprep.subr.mxu0 0.0
        %384 = vmatpush1.msra.mxu0 0.0
        %385 = vmatprep.subr.mxu0 0.0
        %386 = vmatpush1.msra.mxu0 0.0
        %387 = vmatprep.subr.mxu0 0.0
        %388 = vmatpush1.msra.mxu0 0.0
        %389 = vmatprep.subr.mxu0 0.0
        %390 = vmatpush1.msra.mxu0 0.0
        %391 = vmatprep.mubr.f32.mxu0 0.0
        %392 = vmatmul.mubr.f32.gmra.mrb[0].mxu0 %v325
        %v393 = vpop.f32.mrb[0].mxu0
        %v394 = vadd.f32 %v321, %v393
        %v395 = vpop.f32.mrb[0].mxu0
        %396 = vdwg.mxu0
        %v397 = vmax.f32 %v394, 0.0
        %v398 = vld [vmem:[%s1] sm:$0xff]
        %v399 = vld [vmem:[%s1 + $0x8] sm:$0xff]
        %v400 = vld [vmem:[%s1 + $0x10] sm:$0xff]
        %v401 = vld [vmem:[%s1 + $0x18] sm:$0xff]
        %v402 = vld [vmem:[%s4] sm:$0x1]
        %v404 = vlaneseq
        %v405 = vshrl.u32 %v404, 7
        %v406 = vsub.s32 0, %v405
        %v407 = vrot.slane %v402, %v406
        %vm409 = vcmask 261120
        %v411 = vsel %vm409, %v397, 0
        %413 = vmatprep.subr.mxu0 0.0
        %414 = vmatpush1.msra.mxu0 %v398
        %415 = vmatprep.subr.mxu0 0.0
        %416 = vmatpush1.msra.mxu0 %v399
        %417 = vmatprep.subr.mxu0 0.0
        %418 = vmatpush1.msra.mxu0 %v400
        %419 = vmatprep.subr.mxu0 0.0
        %420 = vmatpush1.msra.mxu0 %v401
        %421 = vmatprep.subr.mxu0 0.0
        %422 = vmatpush1.msra.mxu0 0.0
        %423 = vmatprep.subr.mxu0 0.0
        %424 = vmatpush1.msra.mxu0 0.0
        %425 = vmatprep.subr.mxu0 0.0
        %426 = vmatpush1.msra.mxu0 0.0
        %427 = vmatprep.subr.mxu0 0.0
        %428 = vmatpush1.msra.mxu0 0.0
        %429 = vmatprep.subr.mxu0 0.0
        %430 = vmatpush1.msra.mxu0 0.0
        %431 = vmatprep.subr.mxu0 0.0
        %432 = vmatpush1.msra.mxu0 0.0
        %433 = vmatprep.subr.mxu0 0.0
        %434 = vmatpush1.msra.mxu0 0.0
        %435 = vmatprep.subr.mxu0 0.0
        %436 = vmatpush1.msra.mxu0 0.0
        %437 = vmatprep.subr.mxu0 0.0
        %438 = vmatpush1.msra.mxu0 0.0
        %439 = vmatprep.subr.mxu0 0.0
        %440 = vmatpush1.msra.mxu0 0.0
        %441 = vmatprep.subr.mxu0 0.0
        %442 = vmatpush1.msra.mxu0 0.0
        %443 = vmatprep.subr.mxu0 0.0
        %444 = vmatpush1.msra.mxu0 0.0
        %445 = vmatprep.subr.mxu0 0.0
        %446 = vmatpush1.msra.mxu0 0.0
        %447 = vmatprep.subr.mxu0 0.0
        %448 = vmatpush1.msra.mxu0 0.0
        %449 = vmatprep.subr.mxu0 0.0
        %450 = vmatpush1.msra.mxu0 0.0
        %451 = vmatprep.subr.mxu0 0.0
        %452 = vmatpush1.msra.mxu0 0.0
        %453 = vmatprep.subr.mxu0 0.0
        %454 = vmatpush1.msra.mxu0 0.0
        %455 = vmatprep.subr.mxu0 0.0
        %456 = vmatpush1.msra.mxu0 0.0
        %457 = vmatprep.subr.mxu0 0.0
        %458 = vmatpush1.msra.mxu0 0.0
        %459 = vmatprep.subr.mxu0 0.0
        %460 = vmatpush1.msra.mxu0 0.0
        %461 = vmatprep.subr.mxu0 0.0
        %462 = vmatpush1.msra.mxu0 0.0
        %463 = vmatprep.subr.mxu0 0.0
        %464 = vmatpush1.msra.mxu0 0.0
        %465 = vmatprep.subr.mxu0 0.0
        %466 = vmatpush1.msra.mxu0 0.0
        %467 = vmatprep.subr.mxu0 0.0
        %468 = vmatpush1.msra.mxu0 0.0
        %469 = vmatprep.subr.mxu0 0.0
        %470 = vmatpush1.msra.mxu0 0.0
        %471 = vmatprep.subr.mxu0 0.0
        %472 = vmatpush1.msra.mxu0 0.0
        %473 = vmatprep.subr.mxu0 0.0
        %474 = vmatpush1.msra.mxu0 0.0
        %475 = vmatprep.subr.mxu0 0.0
        %476 = vmatpush1.msra.mxu0 0.0
        %477 = vmatprep.mubr.f32.mxu0 0.0
        %478 = vmatmul.mubr.f32.gmra.mrb[0].mxu0 %v411
        %v479 = vpop.f32.mrb[0].mxu0
        %v480 = vadd.f32 %v407, %v479
        %v481 = vpop.f32.mrb[0].mxu0
        %482 = vdwg.mxu0
        %v483 = vmax.f32 %v480, 0.0
        %v484 = vld [vmem:[%s2] sm:$0xff]
        %v485 = vld [vmem:[%s2 + $0x8] sm:$0xff]
        %v486 = vld [vmem:[%s2 + $0x10] sm:$0xff]
        %v487 = vld [vmem:[%s2 + $0x18] sm:$0xff]
        %v488 = vld [vmem:[%s5] sm:$0x1]
        %v490 = vlaneseq
        %v491 = vshrl.u32 %v490, 7
        %v492 = vsub.s32 0, %v491
        %v493 = vrot.slane %v488, %v492
        %v496 = vsel %vm409, %v483, 0
        %498 = vmatprep.subr.mxu0 0.0
        %499 = vmatpush1.msra.mxu0 %v484
        %500 = vmatprep.subr.mxu0 0.0
        %501 = vmatpush1.msra.mxu0 %v485
        %502 = vmatprep.subr.mxu0 0.0
        %503 = vmatpush1.msra.mxu0 %v486
        %504 = vmatprep.subr.mxu0 0.0
        %505 = vmatpush1.msra.mxu0 %v487
        %506 = vmatprep.subr.mxu0 0.0
        %507 = vmatpush1.msra.mxu0 0.0
        %508 = vmatprep.subr.mxu0 0.0
        %509 = vmatpush1.msra.mxu0 0.0
        %510 = vmatprep.subr.mxu0 0.0
        %511 = vmatpush1.msra.mxu0 0.0
        %512 = vmatprep.subr.mxu0 0.0
        %513 = vmatpush1.msra.mxu0 0.0
        %514 = vmatprep.subr.mxu0 0.0
        %515 = vmatpush1.msra.mxu0 0.0
        %516 = vmatprep.subr.mxu0 0.0
        %517 = vmatpush1.msra.mxu0 0.0
        %518 = vmatprep.subr.mxu0 0.0
        %519 = vmatpush1.msra.mxu0 0.0
        %520 = vmatprep.subr.mxu0 0.0
        %521 = vmatpush1.msra.mxu0 0.0
        %522 = vmatprep.subr.mxu0 0.0
        %523 = vmatpush1.msra.mxu0 0.0
        %524 = vmatprep.subr.mxu0 0.0
        %525 = vmatpush1.msra.mxu0 0.0
        %526 = vmatprep.subr.mxu0 0.0
        %527 = vmatpush1.msra.mxu0 0.0
        %528 = vmatprep.subr.mxu0 0.0
        %529 = vmatpush1.msra.mxu0 0.0
        %530 = vmatprep.subr.mxu0 0.0
        %531 = vmatpush1.msra.mxu0 0.0
        %532 = vmatprep.subr.mxu0 0.0
        %533 = vmatpush1.msra.mxu0 0.0
        %534 = vmatprep.subr.mxu0 0.0
        %535 = vmatpush1.msra.mxu0 0.0
        %536 = vmatprep.subr.mxu0 0.0
        %537 = vmatpush1.msra.mxu0 0.0
        %538 = vmatprep.subr.mxu0 0.0
        %539 = vmatpush1.msra.mxu0 0.0
        %540 = vmatprep.subr.mxu0 0.0
        %541 = vmatpush1.msra.mxu0 0.0
        %542 = vmatprep.subr.mxu0 0.0
        %543 = vmatpush1.msra.mxu0 0.0
        %544 = vmatprep.subr.mxu0 0.0
        %545 = vmatpush1.msra.mxu0 0.0
        %546 = vmatprep.subr.mxu0 0.0
        %547 = vmatpush1.msra.mxu0 0.0
        %548 = vmatprep.subr.mxu0 0.0
        %549 = vmatpush1.msra.mxu0 0.0
        %550 = vmatprep.subr.mxu0 0.0
        %551 = vmatpush1.msra.mxu0 0.0
        %552 = vmatprep.subr.mxu0 0.0
        %553 = vmatpush1.msra.mxu0 0.0
        %554 = vmatprep.subr.mxu0 0.0
        %555 = vmatpush1.msra.mxu0 0.0
        %556 = vmatprep.subr.mxu0 0.0
        %557 = vmatpush1.msra.mxu0 0.0
        %558 = vmatprep.subr.mxu0 0.0
        %559 = vmatpush1.msra.mxu0 0.0
        %560 = vmatprep.subr.mxu0 0.0
        %561 = vmatpush1.msra.mxu0 0.0
        %562 = vmatprep.mubr.f32.mxu0 0.0
        %563 = vmatmul.mubr.f32.gmra.mrb[0].mxu0 %v496
        %v564 = vpop.f32.mrb[0].mxu0
        %v565 = vadd.f32 %v493, %v564
        %v566 = vpop.f32.mrb[0].mxu0
        %567 = vdwg.mxu0
        %vm568 = vcmask 64512
        %569 = vst.msk [vmem:[%s300] sm:$0xff] %vm568, %v565
        %p570 = scmp.lt.s32.totalorder %s23, 1
        %s571 = scalar_select %p570, %s23, 1
        %s572 = smul.addr %s571, 8
        %s573 = scalar_lea.vmem %s8, %s572
        // Predicated region
        $region53: #{_actor_apply.2} parent=47 // pred_check
          %p574 = pneg %p193
        $region54: #{_actor_apply.2} parent=47 // pred_check_branch
          %576 = sbr.rel (%p574) target = $region56
        $region55: #{_actor_apply.2} parent=47 // pred_region
          _
        $region56: #{_actor_apply.2} parent=47 // pred_fallthru
          _
      $region48: #{_actor_apply.2} parent=5 // pred_fallthru
        _
      %p577 = scmp.le.s32.totalorder 2, %s18
      // Predicated region
      $region57: #{_actor_apply.2} parent=5 // pred_check
        %p578 = pneg %p577
      $region58: #{_actor_apply.2} parent=5 // pred_check_branch
        %580 = sbr.rel (%p578) target = $region60
      $region59: #{_actor_apply.2} parent=5 // pred_region
        %s581 = ssub.s32 %s18, 2
        // Predicated region
        $region61: #{_actor_apply.2} parent=59 // pred_check
          %p582 = pneg %p199
        $region62: #{_actor_apply.2} parent=59 // pred_check_branch
          %584 = sbr.rel (%p582) target = $region64
        $region63: #{_actor_apply.2} parent=59 // pred_region
          %p585 = scmp.lt.s32.totalorder %s24, 1
          %s586 = scalar_select %p585, %s24, 1
          %s587 = smul.addr %s586, 8
          %s588 = scalar_lea.vmem %s8, %s587
        $region64: #{_actor_apply.2} parent=59 // pred_fallthru
          _
      $region60: #{_actor_apply.2} parent=5 // pred_fallthru
        _
    $region6: #{_actor_apply.2} parent=1 // loop_footer
      %s22 = sadd.s32 1, %s18
    $region7: #{_actor_apply.2} parent=1 // loop_footer_branch
      %17 = sbr.rel target = $region3
    $region8: #{_actor_apply.2} parent=1 // loop_exit
      _
    %589 = vsyncpa [#allocation8], 1
    %s590 = scalar_lea.sflag [#allocation8], 1
    %591 = vsyncpa %s590, 1

</llo_original>
